<compile_context>
chip_gen: v7x
topology: tpu7x:2x2x1
jax: 0.10.0
libtpu: 0.0.40
codegen_flags: <defaults>
</compile_context>

<pallas_src>
import jax
import jax.numpy as jnp
from jax.experimental import pallas as pl
from jax.experimental.pallas import tpu as pltpu


def _round_up(x: int, m: int) -> int:
    return ((x + m - 1) // m) * m


def _pick_tile(total: int, target: int, mult: int) -> int:
    """Largest multiple of `mult` <= min(target, total) that divides `total`."""
    t = min(target, total)
    t -= t % mult
    t = max(t, mult)
    while total % t != 0:
        t -= mult
    return t


def _vmem_limit(bytes_needed: int) -> int:
    # leave headroom, stay within the smallest physical VMEM (v7x: 64 MiB/TC)
    return int(min(max(bytes_needed + (2 << 20), 16 << 20), 64 << 20))


# ---------------------------------------------------------------------------
# Prologue: masked mean pooling + Linear(D, D) + tanh   -> mod [Bp, Dp] bf16
# ---------------------------------------------------------------------------
def _pool_modifier_kernel(emb_ref, mask_ref, wmod_ref, bmod_ref, mod_ref):
    # emb_ref : [TB, S, Dp] bf16    embedded item sequence (this B tile)
    # mask_ref: [TB, S]     f32     1.0 = real item, 0.0 = padding
    # wmod_ref: [Dp, Dp] bf16, bmod_ref: [1, Dp] f32   (resident across B tiles)
    # mod_ref : [TB, Dp] bf16       modified sequence representation

    mask = mask_ref[...]                                      # [TB, S]

    # --- sequence_representation_layer: masked mean pooling over S ---
    emb = emb_ref[...].astype(jnp.float32)                    # [TB, S, Dp]
    summed = jnp.sum(emb * mask[:, :, None], axis=1)          # [TB, Dp]
    counts = jnp.maximum(jnp.sum(mask, axis=1, keepdims=True), 1.0)
    rep = summed / counts                                     # exact divide (one-shot)

    # --- sequence_representation_modifier_layer: Linear(D, D) + tanh ---
    mod = jnp.dot(rep.astype(jnp.bfloat16), wmod_ref[...],
                  preferred_element_type=jnp.float32) + bmod_ref[...]
    mod_ref[...] = jnp.tanh(mod).astype(mod_ref.dtype)        # [TB, Dp] bf16


# ---------------------------------------------------------------------------
# Projection: Linear(D, N_items) streamed over lane-dense N tiles
# ---------------------------------------------------------------------------
def _projection_kernel(mod_ref, wproj_ref, bproj_ref, out_ref):
    # mod_ref  : [TB, Dp] bf16   (resident across the N axis for a given B tile)
    # wproj_ref: [Dp, TN] bf16, bproj_ref: [1, TN] f32   (streamed per N tile)
    # out_ref  : [TB, TN] f32    item-score tile
    out_ref[...] = jnp.dot(mod_ref[...], wproj_ref[...],
                           preferred_element_type=jnp.float32) + bproj_ref[...]


def sequence_recommender_forward(item_ids, padding_mask, params, *, tn=2048):
    """item_ids: [B, S] int32, padding_mask: [B, S], params: dict -> [B, N] f32."""
    emb_table = params["item_embedding"].astype(jnp.bfloat16)    # [num_items, D]
    D = emb_table.shape[1]
    N = params["w_proj"].shape[1]
    B, S = item_ids.shape

    # TPU-friendly padding: B -> 16 (bf16 sublane packing), D/N -> lanes (128).
    b_pad = _round_up(B, 16)
    d_pad = _round_up(D, 128)
    tn = max(128, min(tn - tn % 128 if tn >= 128 else 128, _round_up(N, 128)))
    n_pad = _round_up(N, tn)

    tb_pool = _pick_tile(b_pad, 64, 16)    # B tile for the pooling prologue
    tb_proj = _pick_tile(b_pad, 256, 16)   # B tile for the projection stream

    emb_table = jnp.pad(emb_table, ((0, 0), (0, d_pad - D)))
    w_mod = jnp.pad(params["w_mod"].astype(jnp.bfloat16),
                    ((0, d_pad - D), (0, d_pad - D)))
    b_mod = jnp.pad(params["b_mod"].astype(jnp.float32), ((0, 0), (0, d_pad - D)))
    w_proj = jnp.pad(params["w_proj"].astype(jnp.bfloat16),
                     ((0, d_pad - D), (0, n_pad - N)))
    b_proj = jnp.pad(params["b_proj"].astype(jnp.float32), ((0, 0), (0, n_pad - N)))

    # --- sequence_embedding_layer (gather kept as JAX glue, in bf16) ---
    # TODO(synk): fold the gather into the prologue via scalar-prefetched ids.
    embedded = jnp.take(emb_table, item_ids, axis=0)              # [B, S, Dp] bf16
    embedded = jnp.pad(embedded, ((0, b_pad - B), (0, 0), (0, 0)))
    mask = jnp.pad(padding_mask.astype(jnp.float32), ((0, b_pad - B), (0, 0)))

    # ---------------- stage 1: pooling + modifier (one-shot) ----------------
    pool_bytes = (2 * (tb_pool * S * d_pad * 2 + tb_pool * S * 4)   # emb + mask (2x buf)
                  + 2 * (d_pad * d_pad * 2 + d_pad * 4)             # w_mod + b_mod
                  + 2 * (tb_pool * d_pad * 2)                       # mod out
                  + 4 * tb_pool * S * d_pad)                        # in-kernel f32 temp
    mod = pl.pallas_call(
        _pool_modifier_kernel,
        out_shape=jax.ShapeDtypeStruct((b_pad, d_pad), jnp.bfloat16),
        grid_spec=pltpu.PrefetchScalarGridSpec(
            num_scalar_prefetch=0,
            grid=(b_pad // tb_pool,),
            in_specs=[
                pl.BlockSpec((tb_pool, S, d_pad), lambda i: (i, 0, 0)),  # embedded
                pl.BlockSpec((tb_pool, S), lambda i: (i, 0)),            # mask
                pl.BlockSpec((d_pad, d_pad), lambda i: (0, 0)),          # w_mod
                pl.BlockSpec((1, d_pad), lambda i: (0, 0)),              # b_mod
            ],
            out_specs=pl.BlockSpec((tb_pool, d_pad), lambda i: (i, 0)),
        ),
        compiler_params=pltpu.CompilerParams(
            dimension_semantics=("parallel",),
            vmem_limit_bytes=_vmem_limit(pool_bytes),
        ),
    )(embedded, mask, w_mod, b_mod)

    # ---------------- stage 2: projection stream over N ---------------------
    proj_bytes = (2 * (d_pad * tn * 2 + tn * 4)     # w_proj + b_proj (double-buffered)
                  + 2 * (tb_proj * tn * 4)          # out tile
                  + 2 * (tb_proj * d_pad * 2))      # mod tile
    out = pl.pallas_call(
        _projection_kernel,
        out_shape=jax.ShapeDtypeStruct((b_pad, n_pad), jnp.float32),
        grid_spec=pltpu.PrefetchScalarGridSpec(
            num_scalar_prefetch=0,
            grid=(b_pad // tb_proj, n_pad // tn),     # N innermost: w_proj streams
            in_specs=[
                pl.BlockSpec((tb_proj, d_pad), lambda i, j: (i, 0)),   # mod (resident/i)
                pl.BlockSpec((d_pad, tn), lambda i, j: (0, j)),        # w_proj (streamed)
                pl.BlockSpec((1, tn), lambda i, j: (0, j)),            # b_proj (streamed)
            ],
            out_specs=pl.BlockSpec((tb_proj, tn), lambda i, j: (i, j)),
        ),
        compiler_params=pltpu.CompilerParams(
            dimension_semantics=("parallel", "parallel"),
            vmem_limit_bytes=_vmem_limit(proj_bytes),
        ),
    )(mod, w_proj, b_proj)

    return out[:B, :N]


def _reference_forward(item_ids, padding_mask, params):
    """Pure-JAX f32 reference of the module's forward pass."""
    emb = jnp.take(params["item_embedding"].astype(jnp.float32), item_ids, axis=0)
    mask = padding_mask.astype(jnp.float32)
    summed = jnp.sum(emb * mask[:, :, None], axis=1)
    counts = jnp.maximum(jnp.sum(mask, axis=1, keepdims=True), 1.0)
    rep = summed / counts
    mod = jnp.tanh(rep @ params["w_mod"].astype(jnp.float32)
                   + params["b_mod"].astype(jnp.float32))
    return mod @ params["w_proj"].astype(jnp.float32) + params["b_proj"].astype(jnp.float32)


def init_params(key, num_items, embed_dim):
    k1, k2, k3 = jax.random.split(key, 3)
    return {
        # nn.Embedding(num_items, D)  (stored bf16: streamed dtype in HBM)
        "item_embedding": (jax.random.normal(k1, (num_items, embed_dim),
                                             jnp.float32) * 0.02
                           ).astype(jnp.bfloat16),
        # nn.Linear(D, D) for the representation modifier
        "w_mod": (jax.random.normal(k2, (embed_dim, embed_dim), jnp.float32)
                  * (1.0 / jnp.sqrt(embed_dim))).astype(jnp.bfloat16),
        "b_mod": jnp.zeros((1, embed_dim), jnp.float32),
        # nn.Linear(D, num_items) for the projection layer (bf16 in HBM)
        "w_proj": (jax.random.normal(k3, (embed_dim, num_items), jnp.float32)
                   * (1.0 / jnp.sqrt(embed_dim))).astype(jnp.bfloat16),
        "b_proj": jnp.zeros((1, num_items), jnp.float32),
    }


if __name__ == "__main__":
    B, S, D, NUM_ITEMS = 2, 8, 32, 64

    key = jax.random.PRNGKey(0)
    k_param, k_ids = jax.random.split(key)

    params = init_params(k_param, NUM_ITEMS, D)

    # deterministic example input sequence of item ids + padding mask
    item_ids = jax.random.randint(k_ids, (B, S), minval=1, maxval=NUM_ITEMS,
                                  dtype=jnp.int32)
    # pad out the tail of the second sequence
    padding_mask = jnp.ones((B, S), jnp.float32)
    padding_mask = padding_mask.at[1, S // 2:].set(0.0)
    item_ids = item_ids * padding_mask.astype(jnp.int32)

    scores = sequence_recommender_forward(item_ids, padding_mask, params)
    jax.block_until_ready(scores)

    assert scores.shape == (B, NUM_ITEMS)
    assert jnp.all(jnp.isfinite(scores))

    # loose tolerance: kernel uses bf16 matmuls w/ f32 accumulation
    ref = _reference_forward(item_ids, padding_mask, params)
    assert jnp.allclose(scores, ref, rtol=5e-2, atol=5e-2), (
        float(jnp.max(jnp.abs(scores - ref))))

    print("KERNEL_OK")
</pallas_src>

<mosaic_0001>
module attributes {stable_mosaic.version = 11 : i64} {
  func.func @_pool_modifier_kernel(%arg0: i32, %arg1: memref<16x8x128xbf16, #tpu.memory_space<vmem>>, %arg2: memref<16x8xf32, #tpu.memory_space<vmem>>, %arg3: memref<128x128xbf16, #tpu.memory_space<vmem>>, %arg4: memref<1x128xf32, #tpu.memory_space<vmem>>, %arg5: memref<16x128xbf16, #tpu.memory_space<vmem>>) attributes {dimension_semantics = [#tpu.dimension_semantics<parallel>], iteration_bounds = array<i64: 1>, scalar_prefetch = 0 : i64, scratch_operands = 0 : i64, tpu.core_type = #tpu.core_type<tc>, window_params = [{transform_indices = @transform_0, window_bounds = array<i64: 16, 8, 128>}, {transform_indices = @transform_1, window_bounds = array<i64: 16, 8>}, {pipeline_mode = #tpu.pipeline_mode<synchronous>, transform_indices = @transform_2, window_bounds = array<i64: 128, 128>}, {pipeline_mode = #tpu.pipeline_mode<synchronous>, transform_indices = @transform_3, window_bounds = array<i64: 1, 128>}, {transform_indices = @transform_4, window_bounds = array<i64: 16, 128>}]} {
    %c0 = arith.constant 0 : index
    %c0_0 = arith.constant 0 : index
    %0 = vector.load %arg2[%c0, %c0_0] : memref<16x8xf32, #tpu.memory_space<vmem>>, vector<16x8xf32>
    %c0_1 = arith.constant 0 : index
    %c0_2 = arith.constant 0 : index
    %c0_3 = arith.constant 0 : index
    %1 = vector.load %arg1[%c0_1, %c0_2, %c0_3] : memref<16x8x128xbf16, #tpu.memory_space<vmem>>, vector<16x8x128xbf16>
    %2 = arith.extf %1 : vector<16x8x128xbf16> to vector<16x8x128xf32>
    %3 = vector.shape_cast %0 : vector<16x8xf32> to vector<16x8x1xf32>
    %4 = vector.broadcast %3 : vector<16x8x1xf32> to vector<16x8x128xf32>
    %5 = arith.mulf %2, %4 : vector<16x8x128xf32>
    %cst = arith.constant dense<0.000000e+00> : vector<16x128xf32>
    %6 = vector.multi_reduction <add>, %5, %cst [1] : vector<16x8x128xf32> to vector<16x128xf32>
    %cst_4 = arith.constant dense<0.000000e+00> : vector<16xf32>
    %7 = vector.multi_reduction <add>, %0, %cst_4 [1] : vector<16x8xf32> to vector<16xf32>
    %8 = vector.shape_cast %7 : vector<16xf32> to vector<16x1xf32>
    %cst_5 = arith.constant 1.000000e+00 : f32
    %9 = vector.broadcast %cst_5 : f32 to vector<16x1xf32>
    %10 = arith.maximumf %8, %9 : vector<16x1xf32>
    %11 = vector.broadcast %10 : vector<16x1xf32> to vector<16x128xf32>
    %12 = arith.divf %6, %11 : vector<16x128xf32>
    %13 = arith.truncf %12 : vector<16x128xf32> to vector<16x128xbf16>
    %c0_6 = arith.constant 0 : index
    %c0_7 = arith.constant 0 : index
    %14 = vector.load %arg3[%c0_6, %c0_7] : memref<128x128xbf16, #tpu.memory_space<vmem>>, vector<128x128xbf16>
    %cst_8 = arith.constant dense<0.000000e+00> : vector<16x128xf32>
    %15 = tpu.matmul %13, %14, %cst_8 {dimension_numbers = #tpu.dot_dimension_numbers<[1], [0], [0], [1], [0, 0, 1, 1], [], []>} : vector<16x128xbf16>, vector<128x128xbf16>, vector<16x128xf32> -> vector<16x128xf32>
    %c0_9 = arith.constant 0 : index
    %c0_10 = arith.constant 0 : index
    %16 = vector.load %arg4[%c0_9, %c0_10] : memref<1x128xf32, #tpu.memory_space<vmem>>, vector<1x128xf32>
    %17 = vector.broadcast %16 : vector<1x128xf32> to vector<16x128xf32>
    %18 = arith.addf %15, %17 : vector<16x128xf32>
    %19 = math.tanh %18 : vector<16x128xf32>
    %20 = arith.truncf %19 : vector<16x128xf32> to vector<16x128xbf16>
    %c0_11 = arith.constant 0 : index
    %c0_12 = arith.constant 0 : index
    %21 = vector.load %arg5[%c0_11, %c0_12] : memref<16x128xbf16, #tpu.memory_space<vmem>>, vector<16x128xbf16>
    tpu.vector_store %arg5[%c0_11, %c0_12], %20 {strides = array<i32>} : memref<16x128xbf16, #tpu.memory_space<vmem>>, vector<16x128xbf16>,
    return
  }
  func.func @transform_0(%arg0: i32) -> (i32, i32, i32) {
    %c0_i32 = arith.constant 0 : i32
    %c0_i32_0 = arith.constant 0 : i32
    %c0_i32_1 = arith.constant 0 : i32
    return %arg0, %c0_i32, %c0_i32_0 : i32, i32, i32
  }
  func.func @transform_1(%arg0: i32) -> (i32, i32) {
    %c0_i32 = arith.constant 0 : i32
    %c0_i32_0 = arith.constant 0 : i32
    return %arg0, %c0_i32 : i32, i32
  }
  func.func @transform_2(%arg0: i32) -> (i32, i32) {
    %c0_i32 = arith.constant 0 : i32
    %c0_i32_0 = arith.constant 0 : i32
    %c0_i32_1 = arith.constant 0 : i32
    return %c0_i32, %c0_i32_0 : i32, i32
  }
  func.func @transform_3(%arg0: i32) -> (i32, i32) {
    %c0_i32 = arith.constant 0 : i32
    %c0_i32_0 = arith.constant 0 : i32
    %c0_i32_1 = arith.constant 0 : i32
    return %c0_i32, %c0_i32_0 : i32, i32
  }
  func.func @transform_4(%arg0: i32) -> (i32, i32) {
    %c0_i32 = arith.constant 0 : i32
    %c0_i32_0 = arith.constant 0 : i32
    return %arg0, %c0_i32 : i32, i32
  }
}

</mosaic_0001>

<llo_original>
// kernel: tpu_custom_call.1
$region0: #{tpu_custom_call.1}
  #allocation0 [shape = 'u32[]', space=smem, size = 0x4, offset = 0x4, fixed_abs, tag = 'smem constant byte address 0x4 - core index']
  #allocation1 [shape = 'u32[144,128]{1,0:T(1,128)}', space=vmem, size = 0x12000, scoped, tag = 'internal scratch']
  %s0 = inlined_call_operand.hbm [shape: bf16[16,8,128], index: 0, kind: input, shape index: {}]
  %s1 = inlined_call_operand.vmem [shape: f32[16,8], index: 1, kind: input, shape index: {}]
  %s2 = inlined_call_operand.hbm [shape: bf16[128,128], index: 2, kind: input, shape index: {}]
  %s3 = inlined_call_operand.vmem [shape: f32[1,128], index: 3, kind: input, shape index: {}]
  %s4 = inlined_call_operand.hbm [shape: bf16[16,128], index: 4, kind: output, shape index: {}]
  %s5 = sld [smem:[#allocation0]]
  $region34: #{tpu_custom_call.1} parent=0
    _
  %s7 = ssub.s32 1, %s5
  %s8 = scalar_select 0, %s7, %s5
  $region1: #{tpu_custom_call.1} parent=0
    #allocation2 [shape = 'u8[32768]{0}', space=vmem, size = 0x8000, scoped, tag = 'input window, operand 0, single buffered']
    #allocation3 [shape = 's32[1]{0}', space=sflag, size = 0x4, scoped, tag = 'scoped memory for tpu_custom_call.1']
    #allocation4 [shape = 's32[1]{0}', space=sflag, size = 0x4, scoped, tag = 'scoped memory for tpu_custom_call.1']
    #allocation5 [shape = 'u8[32768]{0}', space=vmem, size = 0x8000, scoped, tag = 'input window, operand 2, single buffered']
    #allocation6 [shape = 's32[1]{0}', space=sflag, size = 0x4, scoped, tag = 'scoped memory for tpu_custom_call.1']
    #allocation7 [shape = 'u8[4096]{0}', space=vmem, size = 0x1000, scoped, tag = 'output window, operand 0, single buffered']
    %9 = vsyncpa [#allocation3], 0
    %10 = vsyncpa [#allocation6], 0
    %11 = vsyncpa [#allocation4], 0
    // Predicated region
    $region2: #{tpu_custom_call.1} parent=1 // pred_check
      _
    $region3: #{tpu_custom_call.1} parent=1 // pred_check_branch
      %13 = sbr.rel (0) target = $region5
    $region4: #{tpu_custom_call.1} parent=1 // pred_region
      %s15 = ssub.s32 1024, 1024
      %16 = vsyncadd [#allocation3], %s15
      %s17 = sshll.u32 [#allocation2], 4
      %s18 = int_to_ptr.vmem [resolvable:$true] %s17
      %23 = dma.hbm_to_vmem [thread:$0]  %s0, 1024, %s18, [#allocation3], 64, 64, 4
    $region5: #{tpu_custom_call.1} parent=1 // pred_fallthru
      _
    // Predicated region
    $region6: #{tpu_custom_call.1} parent=1 // pred_check
      _
    $region7: #{tpu_custom_call.1} parent=1 // pred_check_branch
      %25 = sbr.rel (0) target = $region9
    $region8: #{tpu_custom_call.1} parent=1 // pred_region
      _
    $region9: #{tpu_custom_call.1} parent=1 // pred_fallthru
      _
    // Predicated region
    $region10: #{tpu_custom_call.1} parent=1 // pred_check
      _
    $region11: #{tpu_custom_call.1} parent=1 // pred_check_branch
      %27 = sbr.rel (0) target = $region13
    $region12: #{tpu_custom_call.1} parent=1 // pred_region
      %s29 = ssub.s32 1024, 1024
      %30 = vsyncadd [#allocation6], %s29
      %s31 = sshll.u32 [#allocation5], 4
      %s32 = int_to_ptr.vmem [resolvable:$true] %s31
      %37 = dma.hbm_to_vmem [thread:$0]  %s2, 1024, %s32, [#allocation6], 64, 64, 4
    $region13: #{tpu_custom_call.1} parent=1 // pred_fallthru
      _
    // Predicated region
    $region14: #{tpu_custom_call.1} parent=1 // pred_check
      _
    $region15: #{tpu_custom_call.1} parent=1 // pred_check_branch
      %39 = sbr.rel (0) target = $region17
    $region16: #{tpu_custom_call.1} parent=1 // pred_region
      _
    $region17: #{tpu_custom_call.1} parent=1 // pred_fallthru
      _
    // Predicated region
    $region18: #{tpu_custom_call.1} parent=1 // pred_check
      _
    $region19: #{tpu_custom_call.1} parent=1 // pred_check_branch
      %41 = sbr.rel (0) target = $region21
    $region20: #{tpu_custom_call.1} parent=1 // pred_region
      %42 = dma.done [#allocation3], 1024
    $region21: #{tpu_custom_call.1} parent=1 // pred_fallthru
      _
    // Predicated region
    $region22: #{tpu_custom_call.1} parent=1 // pred_check
      _
    $region23: #{tpu_custom_call.1} parent=1 // pred_check_branch
      %44 = sbr.rel (0) target = $region25
    $region24: #{tpu_custom_call.1} parent=1 // pred_region
      %45 = dma.done [#allocation6], 1024
    $region25: #{tpu_custom_call.1} parent=1 // pred_fallthru
      _
    %v47 = vld [vmem:[%s1] sm:$0xff]
    %v48 = vld [vmem:[%s1 + $0x8] sm:$0xff]
    %v49 = vld [vmem:[#allocation2] sm:$0xf]
    %v50 = vld [vmem:[#allocation2 + $0x4] sm:$0xf]
    %v51 = vld [vmem:[#allocation2 + $0x8] sm:$0xf]
    %v52 = vld [vmem:[#allocation2 + $0xc] sm:$0xf]
    %v53 = vld [vmem:[#allocation2 + $0x10] sm:$0xf]
    %v54 = vld [vmem:[#allocation2 + $0x14] sm:$0xf]
    %v55 = vld [vmem:[#allocation2 + $0x18] sm:$0xf]
    %v56 = vld [vmem:[#allocation2 + $0x1c] sm:$0xf]
    %v57 = vld [vmem:[#allocation2 + $0x20] sm:$0xf]
    %v58 = vld [vmem:[#allocation2 + $0x24] sm:$0xf]
    %v59 = vld [vmem:[#allocation2 + $0x28] sm:$0xf]
    %v60 = vld [vmem:[#allocation2 + $0x2c] sm:$0xf]
    %v61 = vld [vmem:[#allocation2 + $0x30] sm:$0xf]
    %v62 = vld [vmem:[#allocation2 + $0x34] sm:$0xf]
    %v63 = vld [vmem:[#allocation2 + $0x38] sm:$0xf]
    %v64 = vld [vmem:[#allocation2 + $0x3c] sm:$0xf]
    %v65 = vunpack.c.l.bf16 %v49
    %v66 = vunpack.c.l.bf16 %v50
    %v67 = vunpack.c.l.bf16 %v51
    %v68 = vunpack.c.l.bf16 %v52
    %v69 = vunpack.c.l.bf16 %v53
    %v70 = vunpack.c.l.bf16 %v54
    %v71 = vunpack.c.l.bf16 %v55
    %v72 = vunpack.c.l.bf16 %v56
    %v73 = vunpack.c.l.bf16 %v57
    %v74 = vunpack.c.l.bf16 %v58
    %v75 = vunpack.c.l.bf16 %v59
    %v76 = vunpack.c.l.bf16 %v60
    %v77 = vunpack.c.l.bf16 %v61
    %v78 = vunpack.c.l.bf16 %v62
    %v79 = vunpack.c.l.bf16 %v63
    %v80 = vunpack.c.l.bf16 %v64
    %v81 = vlaneseq
    %v82 = vshrl.u32 %v81, 7
    %v83 = vsub.s32 0, %v82
    %v84 = vrot.slane %v47, %v83
    %86 = vbcast.lane.b32.xlu0 %v84, 256
    %v87 = vpop.permute.xlu0 %86
    %v88 = vlaneseq
    %v89 = vshrl.u32 %v88, 7
    %v90 = vsub.s32 1, %v89
    %v91 = vrot.slane %v47, %v90
    %93 = vbcast.lane.b32.xlu0 %v91, 256
    %v94 = vpop.permute.xlu0 %93
    %v95 = vlaneseq
    %v96 = vshrl.u32 %v95, 7
    %v97 = vsub.s32 2, %v96
    %v98 = vrot.slane %v47, %v97
    %100 = vbcast.lane.b32.xlu0 %v98, 256
    %v101 = vpop.permute.xlu0 %100
    %v102 = vlaneseq
    %v103 = vshrl.u32 %v102, 7
    %v104 = vsub.s32 3, %v103
    %v105 = vrot.slane %v47, %v104
    %107 = vbcast.lane.b32.xlu0 %v105, 256
    %v108 = vpop.permute.xlu0 %107
    %v109 = vlaneseq
    %v110 = vshrl.u32 %v109, 7
    %v111 = vsub.s32 4, %v110
    %v112 = vrot.slane %v47, %v111
    %114 = vbcast.lane.b32.xlu0 %v112, 256
    %v115 = vpop.permute.xlu0 %114
    %v116 = vlaneseq
    %v117 = vshrl.u32 %v116, 7
    %v118 = vsub.s32 5, %v117
    %v119 = vrot.slane %v47, %v118
    %121 = vbcast.lane.b32.xlu0 %v119, 256
    %v122 = vpop.permute.xlu0 %121
    %v123 = vlaneseq
    %v124 = vshrl.u32 %v123, 7
    %v125 = vsub.s32 6, %v124
    %v126 = vrot.slane %v47, %v125
    %128 = vbcast.lane.b32.xlu0 %v126, 256
    %v129 = vpop.permute.xlu0 %128
    %v130 = vlaneseq
    %v131 = vshrl.u32 %v130, 7
    %v132 = vsub.s32 7, %v131
    %v133 = vrot.slane %v47, %v132
    %135 = vbcast.lane.b32.xlu0 %v133, 256
    %v136 = vpop.permute.xlu0 %135
    %v137 = vlaneseq
    %v138 = vshrl.u32 %v137, 7
    %v139 = vsub.s32 0, %v138
    %v140 = vrot.slane %v48, %v139
    %142 = vbcast.lane.b32.xlu0 %v140, 256
    %v143 = vpop.permute.xlu0 %142
    %v144 = vlaneseq
    %v145 = vshrl.u32 %v144, 7
    %v146 = vsub.s32 1, %v145
    %v147 = vrot.slane %v48, %v146
    %149 = vbcast.lane.b32.xlu0 %v147, 256
    %v150 = vpop.permute.xlu0 %149
    %v151 = vlaneseq
    %v152 = vshrl.u32 %v151, 7
    %v153 = vsub.s32 2, %v152
    %v154 = vrot.slane %v48, %v153
    %156 = vbcast.lane.b32.xlu0 %v154, 256
    %v157 = vpop.permute.xlu0 %156
    %v158 = vlaneseq
    %v159 = vshrl.u32 %v158, 7
    %v160 = vsub.s32 3, %v159
    %v161 = vrot.slane %v48, %v160
    %163 = vbcast.lane.b32.xlu0 %v161, 256
    %v164 = vpop.permute.xlu0 %163
    %v165 = vlaneseq
    %v166 = vshrl.u32 %v165, 7
    %v167 = vsub.s32 4, %v166
    %v168 = vrot.slane %v48, %v167
    %170 = vbcast.lane.b32.xlu0 %v168, 256
    %v171 = vpop.permute.xlu0 %170
    %v172 = vlaneseq
    %v173 = vshrl.u32 %v172, 7
    %v174 = vsub.s32 5, %v173
    %v175 = vrot.slane %v48, %v174
    %177 = vbcast.lane.b32.xlu0 %v175, 256
    %v178 = vpop.permute.xlu0 %177
    %v179 = vlaneseq
    %v180 = vshrl.u32 %v179, 7
    %v181 = vsub.s32 6, %v180
    %v182 = vrot.slane %v48, %v181
    %184 = vbcast.lane.b32.xlu0 %v182, 256
    %v185 = vpop.permute.xlu0 %184
    %v186 = vlaneseq
    %v187 = vshrl.u32 %v186, 7
    %v188 = vsub.s32 7, %v187
    %v189 = vrot.slane %v48, %v188
    %191 = vbcast.lane.b32.xlu0 %v189, 256
    %v192 = vpop.permute.xlu0 %191
    %v193 = vmul.f32 %v65, %v87
    %v194 = vmul.f32 %v66, %v94
    %v195 = vmul.f32 %v67, %v101
    %v196 = vmul.f32 %v68, %v108
    %v197 = vmul.f32 %v69, %v115
    %v198 = vmul.f32 %v70, %v122
    %v199 = vmul.f32 %v71, %v129
    %v200 = vmul.f32 %v72, %v136
    %v201 = vmul.f32 %v73, %v143
    %v202 = vmul.f32 %v74, %v150
    %v203 = vmul.f32 %v75, %v157
    %v204 = vmul.f32 %v76, %v164
    %v205 = vmul.f32 %v77, %v171
    %v206 = vmul.f32 %v78, %v178
    %v207 = vmul.f32 %v79, %v185
    %v208 = vmul.f32 %v80, %v192
    %v209 = vrot.slane %v193, 4
    %v210 = vadd.f32 %v193, %v209
    %v211 = vrot.slane %v210, 2
    %v212 = vadd.f32 %v210, %v211
    %v213 = vrot.slane %v212, 1
    %v214 = vadd.f32 %v212, %v213
    %v215 = vrot.slane %v194, 4
    %v216 = vadd.f32 %v194, %v215
    %v217 = vrot.slane %v216, 2
    %v218 = vadd.f32 %v216, %v217
    %v219 = vrot.slane %v218, 1
    %v220 = vadd.f32 %v218, %v219
    %v221 = vrot.slane %v195, 4
    %v222 = vadd.f32 %v195, %v221
    %v223 = vrot.slane %v222, 2
    %v224 = vadd.f32 %v222, %v223
    %v225 = vrot.slane %v224, 1
    %v226 = vadd.f32 %v224, %v225
    %v227 = vrot.slane %v196, 4
    %v228 = vadd.f32 %v196, %v227
    %v229 = vrot.slane %v228, 2
    %v230 = vadd.f32 %v228, %v229
    %v231 = vrot.slane %v230, 1
    %v232 = vadd.f32 %v230, %v231
    %v233 = vrot.slane %v197, 4
    %v234 = vadd.f32 %v197, %v233
    %v235 = vrot.slane %v234, 2
    %v236 = vadd.f32 %v234, %v235
    %v237 = vrot.slane %v236, 1
    %v238 = vadd.f32 %v236, %v237
    %v239 = vrot.slane %v198, 4
    %v240 = vadd.f32 %v198, %v239
    %v241 = vrot.slane %v240, 2
    %v242 = vadd.f32 %v240, %v241
    %v243 = vrot.slane %v242, 1
    %v244 = vadd.f32 %v242, %v243
    %v245 = vrot.slane %v199, 4
    %v246 = vadd.f32 %v199, %v245
    %v247 = vrot.slane %v246, 2
    %v248 = vadd.f32 %v246, %v247
    %v249 = vrot.slane %v248, 1
    %v250 = vadd.f32 %v248, %v249
    %v251 = vrot.slane %v200, 4
    %v252 = vadd.f32 %v200, %v251
    %v253 = vrot.slane %v252, 2
    %v254 = vadd.f32 %v252, %v253
    %v255 = vrot.slane %v254, 1
    %v256 = vadd.f32 %v254, %v255
    %v257 = vrot.slane %v201, 4
    %v258 = vadd.f32 %v201, %v257
    %v259 = vrot.slane %v258, 2
    %v260 = vadd.f32 %v258, %v259
    %v261 = vrot.slane %v260, 1
    %v262 = vadd.f32 %v260, %v261
    %v263 = vrot.slane %v202, 4
    %v264 = vadd.f32 %v202, %v263
    %v265 = vrot.slane %v264, 2
    %v266 = vadd.f32 %v264, %v265
    %v267 = vrot.slane %v266, 1
    %v268 = vadd.f32 %v266, %v267
    %v269 = vrot.slane %v203, 4
    %v270 = vadd.f32 %v203, %v269
    %v271 = vrot.slane %v270, 2
    %v272 = vadd.f32 %v270, %v271
    %v273 = vrot.slane %v272, 1
    %v274 = vadd.f32 %v272, %v273
    %v275 = vrot.slane %v204, 4
    %v276 = vadd.f32 %v204, %v275
    %v277 = vrot.slane %v276, 2
    %v278 = vadd.f32 %v276, %v277
    %v279 = vrot.slane %v278, 1
    %v280 = vadd.f32 %v278, %v279
    %v281 = vrot.slane %v205, 4
    %v282 = vadd.f32 %v205, %v281
    %v283 = vrot.slane %v282, 2
    %v284 = vadd.f32 %v282, %v283
    %v285 = vrot.slane %v284, 1
    %v286 = vadd.f32 %v284, %v285
    %v287 = vrot.slane %v206, 4
    %v288 = vadd.f32 %v206, %v287
    %v289 = vrot.slane %v288, 2
    %v290 = vadd.f32 %v288, %v289
    %v291 = vrot.slane %v290, 1
    %v292 = vadd.f32 %v290, %v291
    %v293 = vrot.slane %v207, 4
    %v294 = vadd.f32 %v207, %v293
    %v295 = vrot.slane %v294, 2
    %v296 = vadd.f32 %v294, %v295
    %v297 = vrot.slane %v296, 1
    %v298 = vadd.f32 %v296, %v297
    %v299 = vrot.slane %v208, 4
    %v300 = vadd.f32 %v208, %v299
    %v301 = vrot.slane %v300, 2
    %v302 = vadd.f32 %v300, %v301
    %v303 = vrot.slane %v302, 1
    %v304 = vadd.f32 %v302, %v303
    %vm305 = vcmask 64512
    %v306 = vsel %vm305, %v47, 0.0
    %307 = vadd.xlane.f32.xlu0 %v306
    %v308 = vpop.xlane.xlu0 %307
    %v309 = vsel %vm305, %v48, 0.0
    %310 = vadd.xlane.f32.xlu0 %v309
    %v311 = vpop.xlane.xlu0 %310
    %v312 = vmax.f32 %v308, 1.0
    %v313 = vmax.f32 %v311, 1.0
    %v316 = vrot.slane %v312, 1
    %v317 = vrot.slane %v312, 2
    %v318 = vrot.slane %v312, 3
    %v319 = vrot.slane %v312, 4
    %v320 = vrot.slane %v312, 5
    %v321 = vrot.slane %v312, 6
    %v322 = vrot.slane %v312, 7
    %v323 = vrot.slane %v313, 1
    %v324 = vrot.slane %v313, 2
    %v325 = vrot.slane %v313, 3
    %v326 = vrot.slane %v313, 4
    %v327 = vrot.slane %v313, 5
    %v328 = vrot.slane %v313, 6
    %v329 = vrot.slane %v313, 7
    %v346 = vrcp.pop %v312
    %v347 = vmul.f32 %v214, %v346
    %v348 = vrcp.pop %v316
    %v349 = vmul.f32 %v220, %v348
    %v350 = vrcp.pop %v317
    %v351 = vmul.f32 %v226, %v350
    %v352 = vrcp.pop %v318
    %v353 = vmul.f32 %v232, %v352
    %v354 = vrcp.pop %v319
    %v355 = vmul.f32 %v238, %v354
    %v356 = vrcp.pop %v320
    %v357 = vmul.f32 %v244, %v356
    %v358 = vrcp.pop %v321
    %v359 = vmul.f32 %v250, %v358
    %v360 = vrcp.pop %v322
    %v361 = vmul.f32 %v256, %v360
    %v362 = vrcp.pop %v313
    %v363 = vmul.f32 %v262, %v362
    %v364 = vrcp.pop %v323
    %v365 = vmul.f32 %v268, %v364
    %v366 = vrcp.pop %v324
    %v367 = vmul.f32 %v274, %v366
    %v368 = vrcp.pop %v325
    %v369 = vmul.f32 %v280, %v368
    %v370 = vrcp.pop %v326
    %v371 = vmul.f32 %v286, %v370
    %v372 = vrcp.pop %v327
    %v373 = vmul.f32 %v292, %v372
    %v374 = vrcp.pop %v328
    %v375 = vmul.f32 %v298, %v374
    %v376 = vrcp.pop %v329
    %v377 = vmul.f32 %v304, %v376
    %v378 = vpack.c.bf16 %v347, %v347
    %v379 = vpack.c.bf16 %v349, %v349
    %v380 = vpack.c.bf16 %v351, %v351
    %v381 = vpack.c.bf16 %v353, %v353
    %v382 = vpack.c.bf16 %v355, %v355
    %v383 = vpack.c.bf16 %v357, %v357
    %v384 = vpack.c.bf16 %v359, %v359
    %v385 = vpack.c.bf16 %v361, %v361
    %v386 = vpack.c.bf16 %v363, %v363
    %v387 = vpack.c.bf16 %v365, %v365
    %v388 = vpack.c.bf16 %v367, %v367
    %v389 = vpack.c.bf16 %v369, %v369
    %v390 = vpack.c.bf16 %v371, %v371
    %v391 = vpack.c.bf16 %v373, %v373
    %v392 = vpack.c.bf16 %v375, %v375
    %v393 = vpack.c.bf16 %v377, %v377
    %v394 = vld [vmem:[#allocation5] sm:$0xf]
    %v395 = vld [vmem:[#allocation5 + $0x4] sm:$0xf]
    %v396 = vld [vmem:[#allocation5 + $0x8] sm:$0xf]
    %v397 = vld [vmem:[#allocation5 + $0xc] sm:$0xf]
    %v398 = vld [vmem:[#allocation5 + $0x10] sm:$0xf]
    %v399 = vld [vmem:[#allocation5 + $0x14] sm:$0xf]
    %v400 = vld [vmem:[#allocation5 + $0x18] sm:$0xf]
    %v401 = vld [vmem:[#allocation5 + $0x1c] sm:$0xf]
    %v402 = vld [vmem:[#allocation5 + $0x20] sm:$0xf]
    %v403 = vld [vmem:[#allocation5 + $0x24] sm:$0xf]
    %v404 = vld [vmem:[#allocation5 + $0x28] sm:$0xf]
    %v405 = vld [vmem:[#allocation5 + $0x2c] sm:$0xf]
    %v406 = vld [vmem:[#allocation5 + $0x30] sm:$0xf]
    %v407 = vld [vmem:[#allocation5 + $0x34] sm:$0xf]
    %v408 = vld [vmem:[#allocation5 + $0x38] sm:$0xf]
    %v409 = vld [vmem:[#allocation5 + $0x3c] sm:$0xf]
    %v410 = vld [vmem:[%s3] sm:$0x1]
    %v412 = vlaneseq
    %v413 = vshrl.u32 %v412, 7
    %v414 = vsub.s32 0, %v413
    %v415 = vrot.slane %v410, %v414
    %v433 = vunpack.c.l.b16 %v378
    %v434 = vunpack.c.l.b16 %v379
    %v435 = vunpack.c.l.b16 %v380
    %v436 = vunpack.c.l.b16 %v381
    %v437 = vunpack.c.l.b16 %v382
    %v438 = vunpack.c.l.b16 %v383
    %v439 = vunpack.c.l.b16 %v384
    %v440 = vunpack.c.l.b16 %v385
    %v441 = vunpack.c.l.b16 %v386
    %v442 = vunpack.c.l.b16 %v387
    %v443 = vunpack.c.l.b16 %v388
    %v444 = vunpack.c.l.b16 %v389
    %v445 = vunpack.c.l.b16 %v390
    %v446 = vunpack.c.l.b16 %v391
    %v447 = vunpack.c.l.b16 %v392
    %v448 = vunpack.c.l.b16 %v393
    %v449 = vrot.slane %v434, 7
    %vm450 = vcmask 1041409
    %v451 = vsel %vm450, %v449, %v433
    %v452 = vrot.slane %v435, 6
    %vm453 = vcmask 1042434
    %v454 = vsel %vm453, %v452, %v451
    %v455 = vrot.slane %v436, 5
    %vm456 = vcmask 1043459
    %v457 = vsel %vm456, %v455, %v454
    %v458 = vrot.slane %v437, 4
    %vm459 = vcmask 1044484
    %v460 = vsel %vm459, %v458, %v457
    %v461 = vrot.slane %v438, 3
    %vm462 = vcmask 1045509
    %v463 = vsel %vm462, %v461, %v460
    %v464 = vrot.slane %v439, 2
    %vm465 = vcmask 1046534
    %v466 = vsel %vm465, %v464, %v463
    %v467 = vrot.slane %v440, 1
    %vm468 = vcmask 1047559
    %v469 = vsel %vm468, %v467, %v466
    %v470 = vrot.slane %v442, 7
    %v471 = vsel %vm450, %v470, %v441
    %v472 = vrot.slane %v443, 6
    %v473 = vsel %vm453, %v472, %v471
    %v474 = vrot.slane %v444, 5
    %v475 = vsel %vm456, %v474, %v473
    %v476 = vrot.slane %v445, 4
    %v477 = vsel %vm459, %v476, %v475
    %v478 = vrot.slane %v446, 3
    %v479 = vsel %vm462, %v478, %v477
    %v480 = vrot.slane %v447, 2
    %v481 = vsel %vm465, %v480, %v479
    %v482 = vrot.slane %v448, 1
    %v483 = vsel %vm468, %v482, %v481
    %v484 = vpack.c.b16 %v483, %v469
    %v502 = vunpack.c.l.b16 %v394
    %v503 = vunpack.c.l.b16 %v395
    %v504 = vunpack.c.l.b16 %v396
    %v505 = vunpack.c.l.b16 %v397
    %v506 = vunpack.c.l.b16 %v398
    %v507 = vunpack.c.l.b16 %v399
    %v508 = vunpack.c.l.b16 %v400
    %v509 = vunpack.c.l.b16 %v401
    %v510 = vunpack.c.l.b16 %v402
    %v511 = vunpack.c.l.b16 %v403
    %v512 = vunpack.c.l.b16 %v404
    %v513 = vunpack.c.l.b16 %v405
    %v514 = vunpack.c.l.b16 %v406
    %v515 = vunpack.c.l.b16 %v407
    %v516 = vunpack.c.l.b16 %v408
    %v517 = vunpack.c.l.b16 %v409
    %v518 = vpack.c.b16 %v503, %v502
    %v519 = vpack.c.b16 %v505, %v504
    %v520 = vpack.c.b16 %v507, %v506
    %v521 = vpack.c.b16 %v509, %v508
    %v522 = vpack.c.b16 %v511, %v510
    %v523 = vpack.c.b16 %v513, %v512
    %v524 = vpack.c.b16 %v515, %v514
    %v525 = vpack.c.b16 %v517, %v516
    %534 = vmatprep.subr.bf16.mxu0 0
    %535 = vmatpush1.bf16.msra.mxu0 %v518
    %536 = vmatprep.subr.bf16.mxu0 0
    %537 = vmatpush1.bf16.msra.mxu0 %v519
    %538 = vmatprep.subr.bf16.mxu0 0
    %539 = vmatpush1.bf16.msra.mxu0 %v520
    %540 = vmatprep.subr.bf16.mxu0 0
    %541 = vmatpush1.bf16.msra.mxu0 %v521
    %542 = vmatprep.subr.bf16.mxu0 0
    %543 = vmatpush1.bf16.msra.mxu0 %v522
    %544 = vmatprep.subr.bf16.mxu0 0
    %545 = vmatpush1.bf16.msra.mxu0 %v523
    %546 = vmatprep.subr.bf16.mxu0 0
    %547 = vmatpush1.bf16.msra.mxu0 %v524
    %548 = vmatprep.subr.bf16.mxu0 0
    %549 = vmatpush1.bf16.msra.mxu0 %v525
    %550 = vmatprep.subr.bf16.mxu0 0
    %551 = vmatpush1.bf16.msra.mxu0 0
    %552 = vmatprep.subr.bf16.mxu0 0
    %553 = vmatpush1.bf16.msra.mxu0 0
    %554 = vmatprep.subr.bf16.mxu0 0
    %555 = vmatpush1.bf16.msra.mxu0 0
    %556 = vmatprep.subr.bf16.mxu0 0
    %557 = vmatpush1.bf16.msra.mxu0 0
    %558 = vmatprep.subr.bf16.mxu0 0
    %559 = vmatpush1.bf16.msra.mxu0 0
    %560 = vmatprep.subr.bf16.mxu0 0
    %561 = vmatpush1.bf16.msra.mxu0 0
    %562 = vmatprep.subr.bf16.mxu0 0
    %563 = vmatpush1.bf16.msra.mxu0 0
    %564 = vmatprep.subr.bf16.mxu0 0
    %565 = vmatpush1.bf16.msra.mxu0 0
    %566 = vmatprep.mubr.bf16.mxu0 0
    %567 = vmatmul.mubr.bf16.gmra.mrb[0].mxu0 %v484
    %v568 = vpop.f32.mrb[0].mxu0
    %v569 = vadd.f32 %v415, %v568
    %v570 = vpop.f32.mrb[0].mxu0
    %v571 = vpop.f32.mrb[0].mxu0
    %v572 = vadd.f32 %v415, %v571
    %v573 = vpop.f32.mrb[0].mxu0
    %574 = vdwg.mxu0
    %v575 = vtanh.pop %v569
    %v576 = vtanh.pop %v572
    %v577 = vpack.c.bf16 %v576, %v575
    %v579 = vunpack.c.l.b16 %v577
    %v580 = vunpack.c.h.b16 %v577
    %v581 = vpack.c.b16 %v579, %v579
    %v582 = vpack.c.b16 %v580, %v580
    %585 = vst [vmem:[#allocation7] sm:$0xf] %v581
    %586 = vst [vmem:[#allocation7 + $0x4] sm:$0xf] %v582
    // Predicated region
    $region26: #{tpu_custom_call.1} parent=1 // pred_check
      _
    $region27: #{tpu_custom_call.1} parent=1 // pred_check_branch
      %588 = sbr.rel (0) target = $region29
    $region28: #{tpu_custom_call.1} parent=1 // pred_region
      %s590 = ssub.s32 128, 128
      %591 = vsyncadd [#allocation4], %s590
      %s592 = sshll.u32 [#allocation7], 4
      %s593 = int_to_ptr.vmem [resolvable:$true] %s592
      %598 = dma.vmem_to_hbm [thread:$0]  %s593, 128, %s4, [#allocation4], 64, 64, 4
    $region29: #{tpu_custom_call.1} parent=1 // pred_fallthru
      _
    // Predicated region
    $region30: #{tpu_custom_call.1} parent=1 // pred_check
      _
    $region31: #{tpu_custom_call.1} parent=1 // pred_check_branch
      %600 = sbr.rel (0) target = $region33
    $region32: #{tpu_custom_call.1} parent=1 // pred_region
      %601 = dma.done [#allocation4], 128
    $region33: #{tpu_custom_call.1} parent=1 // pred_fallthru
      _
    %602 = vsyncpa [#allocation3], 1
    %603 = vsyncpa [#allocation6], 1
    %604 = vsyncpa [#allocation4], 1

</llo_original>
